<compile_context>
chip_gen: v6e
topology: v6e:2x2x1
jax: 0.10.0
libtpu: 0.0.40
codegen_flags: <defaults>
</compile_context>

<pallas_src>
import functools
import math

import jax
import jax.numpy as jnp
from jax.experimental import pallas as pl
from jax.experimental.pallas import tpu as pltpu


# ------------------------- generation-aware budgets --------------------------

def _tpu_vmem_capacity_bytes():
    try:
        return int(pltpu.get_tpu_info().vmem_capacity_bytes)
    except Exception:
        return 64 * 1024 * 1024          # conservative default (v7x per-core)


_VMEM_CAP = _tpu_vmem_capacity_bytes()
_VMEM_LIMIT = min(_VMEM_CAP * 3 // 4, 100 * 1024 * 1024)   # 96 MiB v5e/v6e, 48 MiB v7x
_DEFAULT_TILE_M = 512 if _VMEM_CAP >= 96 * 1024 * 1024 else 256


def _round_up(x, m):
    return (x + m - 1) // m * m


def _pick_tile_m(m, tile_m):
    # Multiple of 16 (safe sublane granule for both f32 and bf16 blocks).
    tm = min(tile_m, _round_up(max(m // 2, 1), 16))
    return max(tm, 16)


def _pick_divisor_tile(n, cap, granule):
    """Largest multiple of `granule` that divides n and is <= cap (else n)."""
    best = None
    t = granule
    while t <= min(cap, n):
        if n % t == 0:
            best = t
        t += granule
    return best if best is not None else n


# ----------------------------- projection kernels ----------------------------

def _linear_kernel(x_ref, w_ref, b_ref, o_ref, *, cdt):
    x = x_ref[...].astype(cdt)
    o_ref[...] = (jnp.dot(x, w_ref[...], preferred_element_type=jnp.float32)
                  + b_ref[...]).astype(o_ref.dtype)


def linear(x, w, b, *, out_dtype, tile_m=_DEFAULT_TILE_M):
    """y = x @ w + b.  x: [M, K], w: [K, N] (compute dtype), b: [N] (f32)."""
    M, K = x.shape
    N = w.shape[1]
    tm = _pick_tile_m(M, tile_m)
    kernel = functools.partial(_linear_kernel, cdt=w.dtype)
    return pl.pallas_call(
        kernel,
        out_shape=jax.ShapeDtypeStruct((M, N), out_dtype),
        grid=(pl.cdiv(M, tm),),          # ragged last block: rows independent,
        in_specs=[pl.BlockSpec((tm, K), lambda i: (i, 0)),   # OOB rows masked
                  pl.BlockSpec((K, N), lambda i: (0, 0)),    # on store.
                  pl.BlockSpec((1, N), lambda i: (0, 0))],
        out_specs=pl.BlockSpec((tm, N), lambda i: (i, 0)),
        compiler_params=pltpu.CompilerParams(
            dimension_semantics=("parallel",),
            vmem_limit_bytes=_VMEM_LIMIT),
    )(x, w, b.reshape(1, N).astype(jnp.float32))


def _qkv_kernel(xq_ref, xk_ref, xv_ref, wq_ref, bq_ref, wk_ref, bk_ref,
                wv_ref, bv_ref, oq_ref, ok_ref, ov_ref, *, cdt):
    oq_ref[...] = (jnp.dot(xq_ref[...].astype(cdt), wq_ref[...],
                           preferred_element_type=jnp.float32)
                   + bq_ref[...]).astype(oq_ref.dtype)
    ok_ref[...] = (jnp.dot(xk_ref[...].astype(cdt), wk_ref[...],
                           preferred_element_type=jnp.float32)
                   + bk_ref[...]).astype(ok_ref.dtype)
    ov_ref[...] = (jnp.dot(xv_ref[...].astype(cdt), wv_ref[...],
                           preferred_element_type=jnp.float32)
                   + bv_ref[...]).astype(ov_ref.dtype)


def _qkv_fused_fits(K, Nqk, Nv, tm, x_bytes, w_bytes, o_bytes):
    weights = (2 * K * Nqk + K * Nv) * w_bytes + 4 * (2 * Nqk + Nv)
    streamed = 3 * tm * K * x_bytes + tm * (2 * Nqk + Nv) * o_bytes
    return weights + 2 * streamed < 0.8 * _VMEM_LIMIT


def qkv_projection(xq, xk, xv, wq, bq, wk, bk, wv, bv, *, cdt,
                   tile_m=_DEFAULT_TILE_M):
    """Fused Q/K/V projections sharing one row-tiled, pipelined grid."""
    M, K = xq.shape
    Nqk, Nv = wq.shape[1], wv.shape[1]
    tm = _pick_tile_m(M, tile_m)
    row_spec = pl.BlockSpec((tm, K), lambda i: (i, 0))
    kernel = functools.partial(_qkv_kernel, cdt=cdt)
    return pl.pallas_call(
        kernel,
        out_shape=(jax.ShapeDtypeStruct((M, Nqk), cdt),
                   jax.ShapeDtypeStruct((M, Nqk), cdt),
                   jax.ShapeDtypeStruct((M, Nv), cdt)),
        grid=(pl.cdiv(M, tm),),
        in_specs=[row_spec, row_spec, row_spec,
                  pl.BlockSpec((K, Nqk), lambda i: (0, 0)),
                  pl.BlockSpec((1, Nqk), lambda i: (0, 0)),
                  pl.BlockSpec((K, Nqk), lambda i: (0, 0)),
                  pl.BlockSpec((1, Nqk), lambda i: (0, 0)),
                  pl.BlockSpec((K, Nv), lambda i: (0, 0)),
                  pl.BlockSpec((1, Nv), lambda i: (0, 0))],
        out_specs=(pl.BlockSpec((tm, Nqk), lambda i: (i, 0)),
                   pl.BlockSpec((tm, Nqk), lambda i: (i, 0)),
                   pl.BlockSpec((tm, Nv), lambda i: (i, 0))),
        compiler_params=pltpu.CompilerParams(
            dimension_semantics=("parallel",),
            vmem_limit_bytes=_VMEM_LIMIT),
    )(xq, xk, xv,
      wq, bq.reshape(1, Nqk).astype(jnp.float32),
      wk, bk.reshape(1, Nqk).astype(jnp.float32),
      wv, bv.reshape(1, Nv).astype(jnp.float32))


# ------------------------ circular correlation kernel ------------------------

def _lane_lshift(v, s, length, use_roll):
    """result[..., n] = v[..., (n + s) % length]  (static circular left shift)."""
    s = s % length
    if s == 0:
        return v
    if use_roll:
        return pltpu.roll(v, length - s, axis=v.ndim - 1)
    return jnp.concatenate([v[..., s:], v[..., :s]], axis=-1)


def _lane_rshift(v, s, length, use_roll):
    """result[..., n] = v[..., (n - s) % length]."""
    return _lane_lshift(v, (length - s) % length, length, use_roll)


def _corr_mean_kernel(k_ref, qt_ref, o_ref, g_ref, acc_ref, *,
                      length, block_rows, inv_c, use_roll):
    # k_ref:  (1, block_rows, C) key-row tile   (rows t = r*block_rows + ...)
    # qt_ref: (1, C, L)          queries, pre-transposed (resident across r)
    # o_ref:  (1, 1, L)          mean circular correlation (written at last r)
    # g_ref:  VMEM (block_rows, L) f32  Gram tile  G[t, s] = sum_c k[t,c] q[s,c]
    # acc_ref: VMEM (1, L) f32   running shifted-frame accumulator
    r = pl.program_id(1)
    L = length

    @pl.when(r == 0)
    def _():
        acc_ref[...] = jnp.zeros(acc_ref.shape, jnp.float32)

    # Channel reduction on the MXU (plain (T, C) @ (C, L), no hidden transpose).
    g_ref[...] = jnp.dot(k_ref[0], qt_ref[0], preferred_element_type=jnp.float32)

    n_chunks = block_rows // 8
    rem = block_rows - 8 * n_chunks            # > 0 only in the single-tile case

    sub = jax.lax.broadcasted_iota(jnp.int32, (8, L), 0)
    acc = acc_ref[...]
    # Ascending Horner over 8-row chunks:  acc <- rshift(acc + P_c, 8),
    # P_c[n] = sum_j G[base+j, (n + j) % L]  (rows aligned with 3 log2 shifts).
    for c in range(n_chunks):
        x = g_ref[c * 8:(c + 1) * 8, :]
        for bit in (1, 2, 4):
            shifted = _lane_lshift(x, bit, L, use_roll)
            x = jnp.where((sub & bit) == bit, shifted, x)
        part = jnp.sum(x, axis=0, keepdims=True)
        acc = _lane_rshift(acc + part, 8, L, use_roll)

    if rem:
        # Bring the accumulator back to the absolute frame, then add the
        # (static, < 8) leftover rows one by one.
        acc = _lane_rshift(acc, rem, L, use_roll)
        for idx in range(rem):
            t = 8 * n_chunks + idx
            acc = acc + _lane_rshift(g_ref[t:t + 1, :], L - t, L, use_roll)

    acc_ref[...] = acc

    @pl.when(r == pl.num_programs(1) - 1)
    def _():
        o_ref[0] = acc * inv_c


def corr_mean(k, q_t):
    """k: [B, L, C], q_t: [B, C, L] ->
       corr[b, n] = (1/C) * sum_{t,c} k[b,t,c] * q[b,(t+n)%L,c]   (shape [B, L])."""
    B, L, C = k.shape
    granule = 16 if k.dtype == jnp.bfloat16 else 8
    block_rows = _pick_divisor_tile(L, 256, granule) if L % 8 == 0 else L
    n_r = L // block_rows
    use_roll = (L % 128 == 0)          # pltpu.roll only on 128-aligned lane dims
    kernel = functools.partial(_corr_mean_kernel, length=L,
                               block_rows=block_rows, inv_c=1.0 / C,
                               use_roll=use_roll)
    out = pl.pallas_call(
        kernel,
        out_shape=jax.ShapeDtypeStruct((B, 1, L), jnp.float32),
        grid=(B, n_r),
        in_specs=[pl.BlockSpec((1, block_rows, C), lambda b, r: (b, r, 0)),
                  pl.BlockSpec((1, C, L), lambda b, r: (b, 0, 0))],
        out_specs=pl.BlockSpec((1, 1, L), lambda b, r: (b, 0, 0)),
        scratch_shapes=[pltpu.VMEM((block_rows, L), jnp.float32),
                        pltpu.VMEM((1, L), jnp.float32)],
        compiler_params=pltpu.CompilerParams(
            dimension_semantics=("parallel", "arbitrary"),
            vmem_limit_bytes=_VMEM_LIMIT),
    )(k, q_t)
    return out[:, 0, :]


# ---------------- time-delay aggregation + fused output projection -----------

def _delay_agg_out_kernel(delay_ref, weight_ref, v_ref, wo_ref, bo_ref,
                          o_ref, v2_ref, *, top_k, length, tile_l, w_dtype):
    # delay_ref / weight_ref: SMEM (B*k,) scalar-prefetch (flat 1-D)
    # v_ref: (1, L, C) values for batch b (resident across the L-tile axis)
    # wo_ref: (C, d_model), bo_ref: (1, d_model), o_ref: (1, tile_l, d_model)
    # v2_ref: VMEM (2L, C) f32 doubled values (circular gather == plain slice)
    b = pl.program_id(0)
    j = pl.program_id(1)

    @pl.when(j == 0)
    def _():
        v = v_ref[0].astype(jnp.float32)
        v2_ref[0:length, :] = v
        v2_ref[length:2 * length, :] = v

    base = j * tile_l
    acc = jnp.zeros((tile_l, v_ref.shape[-1]), jnp.float32)
    for i in range(top_k):                       # k = O(log L): static unroll
        d = delay_ref[b * top_k + i]
        w = weight_ref[b * top_k + i]
        acc = acc + w * v2_ref[pl.ds(d + base, tile_l), :]
    # Fused output projection: the aggregated tile is already resident.
    out = jnp.dot(acc.astype(w_dtype), wo_ref[...],
                  preferred_element_type=jnp.float32) + bo_ref[...]
    o_ref[0] = out.astype(o_ref.dtype)


def delay_aggregate_project(delay, weights, v, wo, bo, *, out_dtype=jnp.float32):
    """out[b, l] = (sum_i weights[b,i] * v[b, (l + delay[b,i]) % L]) @ wo + bo."""
    B, L, C = v.shape
    k = delay.shape[1]
    d_model = wo.shape[1]
    tile_l = _pick_divisor_tile(L, 128, 8)
    kernel = functools.partial(_delay_agg_out_kernel, top_k=k, length=L,
                               tile_l=tile_l, w_dtype=wo.dtype)
    grid_spec = pltpu.PrefetchScalarGridSpec(
        num_scalar_prefetch=2,
        grid=(B, L // tile_l),
        in_specs=[pl.BlockSpec((1, L, C), lambda b, j, *_: (b, 0, 0)),
                  pl.BlockSpec((C, d_model), lambda b, j, *_: (0, 0)),
                  pl.BlockSpec((1, d_model), lambda b, j, *_: (0, 0))],
        out_specs=pl.BlockSpec((1, tile_l, d_model), lambda b, j, *_: (b, j, 0)),
        scratch_shapes=[pltpu.VMEM((2 * L, C), jnp.float32)])
    return pl.pallas_call(
        kernel,
        out_shape=jax.ShapeDtypeStruct((B, L, d_model), out_dtype),
        grid_spec=grid_spec,
        compiler_params=pltpu.CompilerParams(
            dimension_semantics=("parallel", "arbitrary"),
            vmem_limit_bytes=_VMEM_LIMIT),
    )(delay.reshape(-1).astype(jnp.int32),
      weights.reshape(-1).astype(jnp.float32),
      v, wo, bo.reshape(1, d_model).astype(jnp.float32))


# -------------------------- AutoCorrelationLayer forward ---------------------

def auto_correlation_layer_forward(params, queries, keys, values,
                                   attn_mask=None, *, n_heads=4, factor=1,
                                   compute_dtype=jnp.bfloat16):
    del attn_mask                                # AutoCorrelation ignores the mask
    B, L, _ = queries.shape
    _, S, _ = keys.shape
    cdt = jnp.dtype(compute_dtype)

    wq = params['wq'].astype(cdt)
    wk = params['wk'].astype(cdt)
    wv = params['wv'].astype(cdt)
    wo = params['wo'].astype(cdt)
    K = wq.shape[0]
    Nqk, Nv = wq.shape[1], wv.shape[1]

    tm = _pick_tile_m(B * L, _DEFAULT_TILE_M)
    xb = jnp.dtype(queries.dtype).itemsize
    if L == S and _qkv_fused_fits(K, Nqk, Nv, tm, xb, cdt.itemsize, cdt.itemsize):
        q2, k2, v2 = qkv_projection(queries.reshape(B * L, -1),
                                    keys.reshape(B * S, -1),
                                    values.reshape(B * S, -1),
                                    wq, params['bq'], wk, params['bk'],
                                    wv, params['bv'], cdt=cdt)
    else:
        q2 = linear(queries.reshape(B * L, -1), wq, params['bq'], out_dtype=cdt)
        k2 = linear(keys.reshape(B * S, -1), wk, params['bk'], out_dtype=cdt)
        v2 = linear(values.reshape(B * S, -1), wv, params['bv'], out_dtype=cdt)

    q3 = q2.reshape(B, L, Nqk)
    k3 = k2.reshape(B, S, Nqk)
    v3 = v2.reshape(B, S, Nv)
    if L > S:                                    # Autoformer zero-pads k/v to L
        k3 = jnp.concatenate([k3, jnp.zeros((B, L - S, Nqk), k3.dtype)], axis=1)
        v3 = jnp.concatenate([v3, jnp.zeros((B, L - S, Nv), v3.dtype)], axis=1)
    elif L < S:
        k3, v3 = k3[:, :L], v3[:, :L]

    # Period-based dependencies: mean over heads/channels of the circular
    # cross-correlation (== irfft(rfft(q) * conj(rfft(k)))), MXU formulation.
    q_t = jnp.swapaxes(q3, 1, 2)                 # (B, C, L): MXU-friendly RHS
    mean_value = corr_mean(k3, q_t)              # (B, L) f32

    # TODO(synk): top-k delay selection + softmax over k scalars stay in plain
    # JAX -- O(B*k) scalar work with no useful Pallas mapping.
    top_k = max(1, int(factor * math.log(L)))
    weights, delay = jax.lax.top_k(mean_value, top_k)
    tmp_corr = jax.nn.softmax(weights, axis=-1)

    out = delay_aggregate_project(delay, tmp_corr, v3, wo, params['bo'])
    return out, None                             # output_attention=False


def init_params(key, d_model, n_heads, d_keys=None, d_values=None):
    d_keys = d_keys or d_model // n_heads
    d_values = d_values or d_model // n_heads
    ks = jax.random.split(key, 8)

    def lin_init(kw, kb, fan_in, fan_out):
        bound = 1.0 / math.sqrt(fan_in)
        w = jax.random.uniform(kw, (fan_in, fan_out), jnp.float32, -bound, bound)
        b = jax.random.uniform(kb, (fan_out,), jnp.float32, -bound, bound)
        return w, b

    wq, bq = lin_init(ks[0], ks[1], d_model, d_keys * n_heads)
    wk, bk = lin_init(ks[2], ks[3], d_model, d_keys * n_heads)
    wv, bv = lin_init(ks[4], ks[5], d_model, d_values * n_heads)
    wo, bo = lin_init(ks[6], ks[7], d_values * n_heads, d_model)
    return dict(wq=wq, bq=bq, wk=wk, bk=bk, wv=wv, bv=bv, wo=wo, bo=bo)


# ------------------------------ pure-JAX reference ---------------------------

def _reference(params, queries, keys, values, n_heads):
    B, L, _ = queries.shape
    H = n_heads
    q = (queries.reshape(B * L, -1) @ params['wq'] + params['bq']).reshape(B, L, H, -1)
    k = (keys.reshape(B * L, -1) @ params['wk'] + params['bk']).reshape(B, L, H, -1)
    v = (values.reshape(B * L, -1) @ params['wv'] + params['bv']).reshape(B, L, H, -1)
    qp = jnp.transpose(q, (0, 2, 3, 1))
    kp = jnp.transpose(k, (0, 2, 3, 1))
    vp = jnp.transpose(v, (0, 2, 3, 1))
    qf = jnp.fft.rfft(qp, axis=-1)
    kf = jnp.fft.rfft(kp, axis=-1)
    corr = jnp.fft.irfft(qf * jnp.conj(kf), n=L, axis=-1)
    mean_value = corr.mean(axis=(1, 2))
    top_k = max(1, int(math.log(L)))
    w, d = jax.lax.top_k(mean_value, top_k)
    tc = jax.nn.softmax(w, axis=-1)
    agg = jnp.zeros_like(vp)
    init_index = jnp.arange(L)
    for i in range(top_k):
        idx = (init_index[None, :] + d[:, i:i + 1]) % L
        pattern = jnp.take_along_axis(vp, idx[:, None, None, :], axis=-1)
        agg = agg + pattern * tc[:, i][:, None, None, None]
    out = jnp.transpose(agg, (0, 3, 1, 2)).reshape(B, L, -1)
    return out @ params['wo'] + params['bo']


# ----------------------------------- main -------------------------------------

if __name__ == "__main__":
    key = jax.random.PRNGKey(0)
    B, L, d_model, n_heads = 2, 8, 32, 4
    kq, kk, kv, kp = jax.random.split(key, 4)
    queries = jax.random.normal(kq, (B, L, d_model), jnp.float32)
    keys = jax.random.normal(kk, (B, L, d_model), jnp.float32)
    values = jax.random.normal(kv, (B, L, d_model), jnp.float32)
    params = init_params(kp, d_model, n_heads)

    # Default production path: bf16 MXU operands / bf16 inter-kernel tensors.
    out_bf16, attn = auto_correlation_layer_forward(
        params, queries, keys, values, None, n_heads=n_heads)
    out_bf16 = jax.block_until_ready(out_bf16)
    assert out_bf16.shape == (B, L, d_model)
    assert attn is None
    assert bool(jnp.all(jnp.isfinite(out_bf16)))

    # f32 path, checked against the pure-JAX (FFT-based) reference.
    out_f32, _ = auto_correlation_layer_forward(
        params, queries, keys, values, None, n_heads=n_heads,
        compute_dtype=jnp.float32)
    out_f32 = jax.block_until_ready(out_f32)
    ref = _reference(params, queries, keys, values, n_heads)
    assert float(jnp.max(jnp.abs(out_f32 - ref))) < 1e-2

    print("KERNEL_OK")
</pallas_src>

<mosaic_0001>
module attributes {stable_mosaic.version = 11 : i64} {
  func.func @_qkv_kernel(%arg0: i32, %arg1: memref<16x32xf32, #tpu.memory_space<vmem>>, %arg2: memref<16x32xf32, #tpu.memory_space<vmem>>, %arg3: memref<16x32xf32, #tpu.memory_space<vmem>>, %arg4: memref<32x32xbf16, #tpu.memory_space<vmem>>, %arg5: memref<1x32xf32, #tpu.memory_space<vmem>>, %arg6: memref<32x32xbf16, #tpu.memory_space<vmem>>, %arg7: memref<1x32xf32, #tpu.memory_space<vmem>>, %arg8: memref<32x32xbf16, #tpu.memory_space<vmem>>, %arg9: memref<1x32xf32, #tpu.memory_space<vmem>>, %arg10: memref<16x32xbf16, #tpu.memory_space<vmem>>, %arg11: memref<16x32xbf16, #tpu.memory_space<vmem>>, %arg12: memref<16x32xbf16, #tpu.memory_space<vmem>>) attributes {dimension_semantics = [#tpu.dimension_semantics<parallel>], iteration_bounds = array<i64: 1>, scalar_prefetch = 0 : i64, scratch_operands = 0 : i64, tpu.core_type = #tpu.core_type<tc>, window_params = [{transform_indices = @transform_0, window_bounds = array<i64: 16, 32>}, {transform_indices = @transform_1, window_bounds = array<i64: 16, 32>}, {transform_indices = @transform_2, window_bounds = array<i64: 16, 32>}, {pipeline_mode = #tpu.pipeline_mode<synchronous>, transform_indices = @transform_3, window_bounds = array<i64: 32, 32>}, {pipeline_mode = #tpu.pipeline_mode<synchronous>, transform_indices = @transform_4, window_bounds = array<i64: 1, 32>}, {pipeline_mode = #tpu.pipeline_mode<synchronous>, transform_indices = @transform_5, window_bounds = array<i64: 32, 32>}, {pipeline_mode = #tpu.pipeline_mode<synchronous>, transform_indices = @transform_6, window_bounds = array<i64: 1, 32>}, {pipeline_mode = #tpu.pipeline_mode<synchronous>, transform_indices = @transform_7, window_bounds = array<i64: 32, 32>}, {pipeline_mode = #tpu.pipeline_mode<synchronous>, transform_indices = @transform_8, window_bounds = array<i64: 1, 32>}, {transform_indices = @transform_9, window_bounds = array<i64: 16, 32>}, {transform_indices = @transform_10, window_bounds = array<i64: 16, 32>}, {transform_indices = @transform_11, window_bounds = array<i64: 16, 32>}]} {
    %c0 = arith.constant 0 : index
    %c0_0 = arith.constant 0 : index
    %0 = vector.load %arg1[%c0, %c0_0] : memref<16x32xf32, #tpu.memory_space<vmem>>, vector<16x32xf32>
    %1 = arith.truncf %0 : vector<16x32xf32> to vector<16x32xbf16>
    %c0_1 = arith.constant 0 : index
    %c0_2 = arith.constant 0 : index
    %2 = vector.load %arg4[%c0_1, %c0_2] : memref<32x32xbf16, #tpu.memory_space<vmem>>, vector<32x32xbf16>
    %cst = arith.constant dense<0.000000e+00> : vector<16x32xf32>
    %3 = tpu.matmul %1, %2, %cst {dimension_numbers = #tpu.dot_dimension_numbers<[1], [0], [0], [1], [0, 0, 1, 1], [], []>} : vector<16x32xbf16>, vector<32x32xbf16>, vector<16x32xf32> -> vector<16x32xf32>
    %c0_3 = arith.constant 0 : index
    %c0_4 = arith.constant 0 : index
    %4 = vector.load %arg5[%c0_3, %c0_4] : memref<1x32xf32, #tpu.memory_space<vmem>>, vector<1x32xf32>
    %5 = vector.broadcast %4 : vector<1x32xf32> to vector<16x32xf32>
    %6 = arith.addf %3, %5 : vector<16x32xf32>
    %7 = arith.truncf %6 : vector<16x32xf32> to vector<16x32xbf16>
    %c0_5 = arith.constant 0 : index
    %c0_6 = arith.constant 0 : index
    %8 = vector.load %arg10[%c0_5, %c0_6] : memref<16x32xbf16, #tpu.memory_space<vmem>>, vector<16x32xbf16>
    tpu.vector_store %arg10[%c0_5, %c0_6], %7 {strides = array<i32>} : memref<16x32xbf16, #tpu.memory_space<vmem>>, vector<16x32xbf16>,
    %c0_7 = arith.constant 0 : index
    %c0_8 = arith.constant 0 : index
    %9 = vector.load %arg2[%c0_7, %c0_8] : memref<16x32xf32, #tpu.memory_space<vmem>>, vector<16x32xf32>
    %10 = arith.truncf %9 : vector<16x32xf32> to vector<16x32xbf16>
    %c0_9 = arith.constant 0 : index
    %c0_10 = arith.constant 0 : index
    %11 = vector.load %arg6[%c0_9, %c0_10] : memref<32x32xbf16, #tpu.memory_space<vmem>>, vector<32x32xbf16>
    %cst_11 = arith.constant dense<0.000000e+00> : vector<16x32xf32>
    %12 = tpu.matmul %10, %11, %cst_11 {dimension_numbers = #tpu.dot_dimension_numbers<[1], [0], [0], [1], [0, 0, 1, 1], [], []>} : vector<16x32xbf16>, vector<32x32xbf16>, vector<16x32xf32> -> vector<16x32xf32>
    %c0_12 = arith.constant 0 : index
    %c0_13 = arith.constant 0 : index
    %13 = vector.load %arg7[%c0_12, %c0_13] : memref<1x32xf32, #tpu.memory_space<vmem>>, vector<1x32xf32>
    %14 = vector.broadcast %13 : vector<1x32xf32> to vector<16x32xf32>
    %15 = arith.addf %12, %14 : vector<16x32xf32>
    %16 = arith.truncf %15 : vector<16x32xf32> to vector<16x32xbf16>
    %c0_14 = arith.constant 0 : index
    %c0_15 = arith.constant 0 : index
    %17 = vector.load %arg11[%c0_14, %c0_15] : memref<16x32xbf16, #tpu.memory_space<vmem>>, vector<16x32xbf16>
    tpu.vector_store %arg11[%c0_14, %c0_15], %16 {strides = array<i32>} : memref<16x32xbf16, #tpu.memory_space<vmem>>, vector<16x32xbf16>,
    %c0_16 = arith.constant 0 : index
    %c0_17 = arith.constant 0 : index
    %18 = vector.load %arg3[%c0_16, %c0_17] : memref<16x32xf32, #tpu.memory_space<vmem>>, vector<16x32xf32>
    %19 = arith.truncf %18 : vector<16x32xf32> to vector<16x32xbf16>
    %c0_18 = arith.constant 0 : index
    %c0_19 = arith.constant 0 : index
    %20 = vector.load %arg8[%c0_18, %c0_19] : memref<32x32xbf16, #tpu.memory_space<vmem>>, vector<32x32xbf16>
    %cst_20 = arith.constant dense<0.000000e+00> : vector<16x32xf32>
    %21 = tpu.matmul %19, %20, %cst_20 {dimension_numbers = #tpu.dot_dimension_numbers<[1], [0], [0], [1], [0, 0, 1, 1], [], []>} : vector<16x32xbf16>, vector<32x32xbf16>, vector<16x32xf32> -> vector<16x32xf32>
    %c0_21 = arith.constant 0 : index
    %c0_22 = arith.constant 0 : index
    %22 = vector.load %arg9[%c0_21, %c0_22] : memref<1x32xf32, #tpu.memory_space<vmem>>, vector<1x32xf32>
    %23 = vector.broadcast %22 : vector<1x32xf32> to vector<16x32xf32>
    %24 = arith.addf %21, %23 : vector<16x32xf32>
    %25 = arith.truncf %24 : vector<16x32xf32> to vector<16x32xbf16>
    %c0_23 = arith.constant 0 : index
    %c0_24 = arith.constant 0 : index
    %26 = vector.load %arg12[%c0_23, %c0_24] : memref<16x32xbf16, #tpu.memory_space<vmem>>, vector<16x32xbf16>
    tpu.vector_store %arg12[%c0_23, %c0_24], %25 {strides = array<i32>} : memref<16x32xbf16, #tpu.memory_space<vmem>>, vector<16x32xbf16>,
    return
  }
  func.func @transform_0(%arg0: i32) -> (i32, i32) {
    %c0_i32 = arith.constant 0 : i32
    %c0_i32_0 = arith.constant 0 : i32
    return %arg0, %c0_i32 : i32, i32
  }
  func.func @transform_1(%arg0: i32) -> (i32, i32) {
    %c0_i32 = arith.constant 0 : i32
    %c0_i32_0 = arith.constant 0 : i32
    return %arg0, %c0_i32 : i32, i32
  }
  func.func @transform_2(%arg0: i32) -> (i32, i32) {
    %c0_i32 = arith.constant 0 : i32
    %c0_i32_0 = arith.constant 0 : i32
    return %arg0, %c0_i32 : i32, i32
  }
  func.func @transform_3(%arg0: i32) -> (i32, i32) {
    %c0_i32 = arith.constant 0 : i32
    %c0_i32_0 = arith.constant 0 : i32
    %c0_i32_1 = arith.constant 0 : i32
    return %c0_i32, %c0_i32_0 : i32, i32
  }
  func.func @transform_4(%arg0: i32) -> (i32, i32) {
    %c0_i32 = arith.constant 0 : i32
    %c0_i32_0 = arith.constant 0 : i32
    %c0_i32_1 = arith.constant 0 : i32
    return %c0_i32, %c0_i32_0 : i32, i32
  }
  func.func @transform_5(%arg0: i32) -> (i32, i32) {
    %c0_i32 = arith.constant 0 : i32
    %c0_i32_0 = arith.constant 0 : i32
    %c0_i32_1 = arith.constant 0 : i32
    return %c0_i32, %c0_i32_0 : i32, i32
  }
  func.func @transform_6(%arg0: i32) -> (i32, i32) {
    %c0_i32 = arith.constant 0 : i32
    %c0_i32_0 = arith.constant 0 : i32
    %c0_i32_1 = arith.constant 0 : i32
    return %c0_i32, %c0_i32_0 : i32, i32
  }
  func.func @transform_7(%arg0: i32) -> (i32, i32) {
    %c0_i32 = arith.constant 0 : i32
    %c0_i32_0 = arith.constant 0 : i32
    %c0_i32_1 = arith.constant 0 : i32
    return %c0_i32, %c0_i32_0 : i32, i32
  }
  func.func @transform_8(%arg0: i32) -> (i32, i32) {
    %c0_i32 = arith.constant 0 : i32
    %c0_i32_0 = arith.constant 0 : i32
    %c0_i32_1 = arith.constant 0 : i32
    return %c0_i32, %c0_i32_0 : i32, i32
  }
  func.func @transform_9(%arg0: i32) -> (i32, i32) {
    %c0_i32 = arith.constant 0 : i32
    %c0_i32_0 = arith.constant 0 : i32
    return %arg0, %c0_i32 : i32, i32
  }
  func.func @transform_10(%arg0: i32) -> (i32, i32) {
    %c0_i32 = arith.constant 0 : i32
    %c0_i32_0 = arith.constant 0 : i32
    return %arg0, %c0_i32 : i32, i32
  }
  func.func @transform_11(%arg0: i32) -> (i32, i32) {
    %c0_i32 = arith.constant 0 : i32
    %c0_i32_0 = arith.constant 0 : i32
    return %arg0, %c0_i32 : i32, i32
  }
}

</mosaic_0001>

<llo_original>
// kernel: tpu_custom_call.1
$region0: #{tpu_custom_call.1}
  #allocation0 [shape = 'u32[]', space=smem, size = 0x4, offset = 0x4, fixed_abs, tag = 'smem constant byte address 0x4 - core index']
  #allocation1 [shape = 'u32[144,128]{1,0:T(1,128)}', space=vmem, size = 0x12000, scoped, tag = 'internal scratch']
  %s0 = inlined_call_operand.hbm [shape: f32[16,32], index: 0, kind: input, shape index: {}]
  %s1 = inlined_call_operand.hbm [shape: f32[16,32], index: 1, kind: input, shape index: {}]
  %s2 = inlined_call_operand.hbm [shape: f32[16,32], index: 2, kind: input, shape index: {}]
  %s3 = inlined_call_operand.hbm [shape: bf16[32,32], index: 3, kind: input, shape index: {}]
  %s4 = inlined_call_operand.vmem [shape: f32[1,32], index: 4, kind: input, shape index: {}]
  %s5 = inlined_call_operand.hbm [shape: bf16[32,32], index: 5, kind: input, shape index: {}]
  %s6 = inlined_call_operand.vmem [shape: f32[1,32], index: 6, kind: input, shape index: {}]
  %s7 = inlined_call_operand.hbm [shape: bf16[32,32], index: 7, kind: input, shape index: {}]
  %s8 = inlined_call_operand.vmem [shape: f32[1,32], index: 8, kind: input, shape index: {}]
  %s9 = inlined_call_operand.hbm [shape: bf16[16,32], index: 9, kind: output, shape index: {0}]
  %s10 = inlined_call_operand.hbm [shape: bf16[16,32], index: 10, kind: output, shape index: {1}]
  %s11 = inlined_call_operand.hbm [shape: bf16[16,32], index: 11, kind: output, shape index: {2}]
  %12 = xla_tuple %s9, %s10, %s11
  %s13 = sld [smem:[#allocation0]]
  $region86: #{tpu_custom_call.1} parent=0
    _
  %s15 = ssub.s32 1, %s13
  %s16 = scalar_select 0, %s15, %s13
  $region1: #{tpu_custom_call.1} parent=0
    #allocation2 [shape = 'u8[8192]{0}', space=vmem, size = 0x2000, scoped, tag = 'input window, operand 0, single buffered']
    #allocation3 [shape = 's32[1]{0}', space=sflag, size = 0x4, scoped, tag = 'scoped memory for tpu_custom_call.1']
    #allocation4 [shape = 's32[1]{0}', space=sflag, size = 0x4, scoped, tag = 'scoped memory for tpu_custom_call.1']
    #allocation5 [shape = 'u8[8192]{0}', space=vmem, size = 0x2000, scoped, tag = 'input window, operand 1, single buffered']
    #allocation6 [shape = 's32[1]{0}', space=sflag, size = 0x4, scoped, tag = 'scoped memory for tpu_custom_call.1']
    #allocation7 [shape = 'u8[8192]{0}', space=vmem, size = 0x2000, scoped, tag = 'input window, operand 2, single buffered']
    #allocation8 [shape = 'u8[8192]{0}', space=vmem, size = 0x2000, scoped, tag = 'input window, operand 3, single buffered']
    #allocation9 [shape = 's32[1]{0}', space=sflag, size = 0x4, scoped, tag = 'scoped memory for tpu_custom_call.1']
    #allocation10 [shape = 'u8[8192]{0}', space=vmem, size = 0x2000, scoped, tag = 'input window, operand 5, single buffered']
    #allocation11 [shape = 'u8[8192]{0}', space=vmem, size = 0x2000, scoped, tag = 'input window, operand 7, single buffered']
    #allocation12 [shape = 's32[1]{0}', space=sflag, size = 0x4, scoped, tag = 'scoped memory for tpu_custom_call.1']
    #allocation13 [shape = 'u8[4096]{0}', space=vmem, size = 0x1000, scoped, tag = 'output window, operand 0, single buffered']
    #allocation14 [shape = 'u8[4096]{0}', space=vmem, size = 0x1000, scoped, tag = 'output window, operand 1, single buffered']
    #allocation15 [shape = 's32[1]{0}', space=sflag, size = 0x4, scoped, tag = 'scoped memory for tpu_custom_call.1']
    #allocation16 [shape = 'u8[4096]{0}', space=vmem, size = 0x1000, scoped, tag = 'output window, operand 2, single buffered']
    %17 = vsyncpa [#allocation3], 0
    %18 = vsyncpa [#allocation6], 0
    %19 = vsyncpa [#allocation9], 0
    %20 = vsyncpa [#allocation12], 0
    %21 = vsyncpa [#allocation4], 0
    %22 = vsyncpa [#allocation15], 0
    // Predicated region
    $region2: #{tpu_custom_call.1} parent=1 // pred_check
      _
    $region3: #{tpu_custom_call.1} parent=1 // pred_check_branch
      %24 = sbr.rel (0) target = $region5
    $region4: #{tpu_custom_call.1} parent=1 // pred_region
      %s26 = ssub.s32 256, 256
      %27 = vsyncadd [#allocation3], %s26
      %s28 = sshll.u32 [#allocation2], 4
      %s29 = int_to_ptr.vmem [resolvable:$true] %s28
      %34 = dma.hbm_to_vmem [thread:$0]  %s0, 256, %s29, [#allocation3], 128, 128, 8
    $region5: #{tpu_custom_call.1} parent=1 // pred_fallthru
      _
    // Predicated region
    $region6: #{tpu_custom_call.1} parent=1 // pred_check
      _
    $region7: #{tpu_custom_call.1} parent=1 // pred_check_branch
      %36 = sbr.rel (0) target = $region9
    $region8: #{tpu_custom_call.1} parent=1 // pred_region
      %s38 = ssub.s32 256, 256
      %39 = vsyncadd [#allocation6], %s38
      %s40 = sshll.u32 [#allocation5], 4
      %s41 = int_to_ptr.vmem [resolvable:$true] %s40
      %46 = dma.hbm_to_vmem [thread:$0]  %s1, 256, %s41, [#allocation6], 128, 128, 8
    $region9: #{tpu_custom_call.1} parent=1 // pred_fallthru
      _
    // Predicated region
    $region10: #{tpu_custom_call.1} parent=1 // pred_check
      _
    $region11: #{tpu_custom_call.1} parent=1 // pred_check_branch
      %48 = sbr.rel (0) target = $region13
    $region12: #{tpu_custom_call.1} parent=1 // pred_region
      %s50 = ssub.s32 256, 256
      %51 = vsyncadd [#allocation6], %s50
      %s52 = sshll.u32 [#allocation7], 4
      %s53 = int_to_ptr.vmem [resolvable:$true] %s52
      %58 = dma.hbm_to_vmem [thread:$0]  %s2, 256, %s53, [#allocation6], 128, 128, 8
    $region13: #{tpu_custom_call.1} parent=1 // pred_fallthru
      _
    // Predicated region
    $region14: #{tpu_custom_call.1} parent=1 // pred_check
      _
    $region15: #{tpu_custom_call.1} parent=1 // pred_check_branch
      %60 = sbr.rel (0) target = $region17
    $region16: #{tpu_custom_call.1} parent=1 // pred_region
      %s62 = ssub.s32 256, 256
      %63 = vsyncadd [#allocation9], %s62
      %s64 = sshll.u32 [#allocation8], 4
      %s65 = int_to_ptr.vmem [resolvable:$true] %s64
      %70 = dma.hbm_to_vmem [thread:$0]  %s3, 256, %s65, [#allocation9], 64, 64, 4
    $region17: #{tpu_custom_call.1} parent=1 // pred_fallthru
      _
    // Predicated region
    $region18: #{tpu_custom_call.1} parent=1 // pred_check
      _
    $region19: #{tpu_custom_call.1} parent=1 // pred_check_branch
      %72 = sbr.rel (0) target = $region21
    $region20: #{tpu_custom_call.1} parent=1 // pred_region
      _
    $region21: #{tpu_custom_call.1} parent=1 // pred_fallthru
      _
    // Predicated region
    $region22: #{tpu_custom_call.1} parent=1 // pred_check
      _
    $region23: #{tpu_custom_call.1} parent=1 // pred_check_branch
      %74 = sbr.rel (0) target = $region25
    $region24: #{tpu_custom_call.1} parent=1 // pred_region
      %s76 = ssub.s32 256, 256
      %77 = vsyncadd [#allocation9], %s76
      %s78 = sshll.u32 [#allocation10], 4
      %s79 = int_to_ptr.vmem [resolvable:$true] %s78
      %84 = dma.hbm_to_vmem [thread:$0]  %s5, 256, %s79, [#allocation9], 64, 64, 4
    $region25: #{tpu_custom_call.1} parent=1 // pred_fallthru
      _
    // Predicated region
    $region26: #{tpu_custom_call.1} parent=1 // pred_check
      _
    $region27: #{tpu_custom_call.1} parent=1 // pred_check_branch
      %86 = sbr.rel (0) target = $region29
    $region28: #{tpu_custom_call.1} parent=1 // pred_region
      _
    $region29: #{tpu_custom_call.1} parent=1 // pred_fallthru
      _
    // Predicated region
    $region30: #{tpu_custom_call.1} parent=1 // pred_check
      _
    $region31: #{tpu_custom_call.1} parent=1 // pred_check_branch
      %88 = sbr.rel (0) target = $region33
    $region32: #{tpu_custom_call.1} parent=1 // pred_region
      %s90 = ssub.s32 256, 256
      %91 = vsyncadd [#allocation12], %s90
      %s92 = sshll.u32 [#allocation11], 4
      %s93 = int_to_ptr.vmem [resolvable:$true] %s92
      %98 = dma.hbm_to_vmem [thread:$0]  %s7, 256, %s93, [#allocation12], 64, 64, 4
    $region33: #{tpu_custom_call.1} parent=1 // pred_fallthru
      _
    // Predicated region
    $region34: #{tpu_custom_call.1} parent=1 // pred_check
      _
    $region35: #{tpu_custom_call.1} parent=1 // pred_check_branch
      %100 = sbr.rel (0) target = $region37
    $region36: #{tpu_custom_call.1} parent=1 // pred_region
      _
    $region37: #{tpu_custom_call.1} parent=1 // pred_fallthru
      _
    // Predicated region
    $region38: #{tpu_custom_call.1} parent=1 // pred_check
      _
    $region39: #{tpu_custom_call.1} parent=1 // pred_check_branch
      %102 = sbr.rel (0) target = $region41
    $region40: #{tpu_custom_call.1} parent=1 // pred_region
      %103 = dma.done [#allocation3], 256
    $region41: #{tpu_custom_call.1} parent=1 // pred_fallthru
      _
    // Predicated region
    $region42: #{tpu_custom_call.1} parent=1 // pred_check
      _
    $region43: #{tpu_custom_call.1} parent=1 // pred_check_branch
      %105 = sbr.rel (0) target = $region45
    $region44: #{tpu_custom_call.1} parent=1 // pred_region
      %106 = dma.done [#allocation6], 256
    $region45: #{tpu_custom_call.1} parent=1 // pred_fallthru
      _
    // Predicated region
    $region46: #{tpu_custom_call.1} parent=1 // pred_check
      _
    $region47: #{tpu_custom_call.1} parent=1 // pred_check_branch
      %108 = sbr.rel (0) target = $region49
    $region48: #{tpu_custom_call.1} parent=1 // pred_region
      %109 = dma.done [#allocation6], 256
    $region49: #{tpu_custom_call.1} parent=1 // pred_fallthru
      _
    // Predicated region
    $region50: #{tpu_custom_call.1} parent=1 // pred_check
      _
    $region51: #{tpu_custom_call.1} parent=1 // pred_check_branch
      %111 = sbr.rel (0) target = $region53
    $region52: #{tpu_custom_call.1} parent=1 // pred_region
      %112 = dma.done [#allocation9], 256
    $region53: #{tpu_custom_call.1} parent=1 // pred_fallthru
      _
    // Predicated region
    $region54: #{tpu_custom_call.1} parent=1 // pred_check
      _
    $region55: #{tpu_custom_call.1} parent=1 // pred_check_branch
      %114 = sbr.rel (0) target = $region57
    $region56: #{tpu_custom_call.1} parent=1 // pred_region
      %115 = dma.done [#allocation9], 256
    $region57: #{tpu_custom_call.1} parent=1 // pred_fallthru
      _
    // Predicated region
    $region58: #{tpu_custom_call.1} parent=1 // pred_check
      _
    $region59: #{tpu_custom_call.1} parent=1 // pred_check_branch
      %117 = sbr.rel (0) target = $region61
    $region60: #{tpu_custom_call.1} parent=1 // pred_region
      %118 = dma.done [#allocation12], 256
    $region61: #{tpu_custom_call.1} parent=1 // pred_fallthru
      _
    %v120 = vld [vmem:[#allocation2] sm:$0xff]
    %v121 = vld [vmem:[#allocation2 + $0x8] sm:$0xff]
    %v122 = vpack.c.bf16 %v121, %v120
    %v123 = vld [vmem:[#allocation8] sm:$0xf]
    %v124 = vld [vmem:[#allocation8 + $0x4] sm:$0xf]
    %v125 = vld [vmem:[#allocation8 + $0x8] sm:$0xf]
    %v126 = vld [vmem:[#allocation8 + $0xc] sm:$0xf]
    %v127 = vld [vmem:[%s4] sm:$0x1]
    %v129 = vlaneseq
    %v130 = vshrl.u32 %v129, 7
    %v131 = vsub.s32 0, %v130
    %v132 = vrot.slane %v127, %v131
    %v138 = vunpack.c.l.b16 %v123
    %v139 = vunpack.c.l.b16 %v124
    %v140 = vunpack.c.l.b16 %v125
    %v141 = vunpack.c.l.b16 %v126
    %v142 = vpack.c.b16 %v139, %v138
    %v143 = vpack.c.b16 %v141, %v140
    %vm146 = vcmask 261120
    %v148 = vsel %vm146, %v122, 0
    %150 = vmatprep.subr.bf16.mxu0 0
    %151 = vmatpush1.bf16.msra.mxu0 0
    %152 = vmatprep.subr.bf16.mxu0 0
    %153 = vmatpush1.bf16.msra.mxu0 0
    %154 = vmatprep.subr.bf16.mxu0 0
    %155 = vmatpush1.bf16.msra.mxu0 0
    %156 = vmatprep.subr.bf16.mxu0 0
    %157 = vmatpush1.bf16.msra.mxu0 0
    %158 = vmatprep.subr.bf16.mxu0 0
    %159 = vmatpush1.bf16.msra.mxu0 0
    %160 = vmatprep.subr.bf16.mxu0 0
    %161 = vmatpush1.bf16.msra.mxu0 0
    %162 = vmatprep.subr.bf16.mxu0 0
    %163 = vmatpush1.bf16.msra.mxu0 %v143
    %164 = vmatprep.subr.bf16.mxu0 0
    %165 = vmatpush1.bf16.msra.mxu0 %v142
    %166 = vmatprep.subr.bf16.mxu0 0
    %167 = vmatpush2.bf16.msra.mxu0 0
    %168 = vmatprep.subr.bf16.mxu0 0
    %169 = vmatpush2.bf16.msra.mxu0 0
    %170 = vmatprep.subr.bf16.mxu0 0
    %171 = vmatpush2.bf16.msra.mxu0 0
    %172 = vmatprep.subr.bf16.mxu0 0
    %173 = vmatpush2.bf16.msra.mxu0 0
    %174 = vmatprep.subr.bf16.mxu0 0
    %175 = vmatpush2.bf16.msra.mxu0 0
    %176 = vmatprep.subr.bf16.mxu0 0
    %177 = vmatpush2.bf16.msra.mxu0 0
    %178 = vmatprep.subr.bf16.mxu0 0
    %179 = vmatpush2.bf16.msra.mxu0 0
    %180 = vmatprep.subr.bf16.mxu0 0
    %181 = vmatpush2.bf16.msra.mxu0 0
    %182 = vmatprep.mubr.bf16.mxu0 0
    %183 = vmatmul.mubr.bf16.gmra.mxu0 %v148
    %v184 = vpop.f32.mrf.mxu0
    %v185 = vadd.f32 %v132, %v184
    %v186 = vpop.f32.mrf.mxu0
    %v187 = vpop.f32.mrf.mxu0
    %v188 = vadd.f32 %v132, %v187
    %v189 = vpop.f32.mrf.mxu0
    %190 = vdwg.mxu0
    %v191 = vpack.c.bf16 %v188, %v185
    %v193 = vunpack.c.l.b16 %v191
    %v194 = vunpack.c.h.b16 %v191
    %v195 = vpack.c.b16 %v193, %v193
    %v196 = vpack.c.b16 %v194, %v194
    %vm199 = vcmask 257024
    %200 = vst.msk [vmem:[#allocation13] sm:$0xf] %vm199, %v195
    %201 = vst.msk [vmem:[#allocation13 + $0x4] sm:$0xf] %vm199, %v196
    %v202 = vld [vmem:[#allocation5] sm:$0xff]
    %v203 = vld [vmem:[#allocation5 + $0x8] sm:$0xff]
    %v204 = vpack.c.bf16 %v203, %v202
    %v205 = vld [vmem:[#allocation10] sm:$0xf]
    %v206 = vld [vmem:[#allocation10 + $0x4] sm:$0xf]
    %v207 = vld [vmem:[#allocation10 + $0x8] sm:$0xf]
    %v208 = vld [vmem:[#allocation10 + $0xc] sm:$0xf]
    %v209 = vld [vmem:[%s6] sm:$0x1]
    %v211 = vlaneseq
    %v212 = vshrl.u32 %v211, 7
    %v213 = vsub.s32 0, %v212
    %v214 = vrot.slane %v209, %v213
    %v220 = vunpack.c.l.b16 %v205
    %v221 = vunpack.c.l.b16 %v206
    %v222 = vunpack.c.l.b16 %v207
    %v223 = vunpack.c.l.b16 %v208
    %v224 = vpack.c.b16 %v221, %v220
    %v225 = vpack.c.b16 %v223, %v222
    %v229 = vsel %vm146, %v204, 0
    %231 = vmatprep.subr.bf16.mxu0 0
    %232 = vmatpush1.bf16.msra.mxu0 0
    %233 = vmatprep.subr.bf16.mxu0 0
    %234 = vmatpush1.bf16.msra.mxu0 0
    %235 = vmatprep.subr.bf16.mxu0 0
    %236 = vmatpush1.bf16.msra.mxu0 0
    %237 = vmatprep.subr.bf16.mxu0 0
    %238 = vmatpush1.bf16.msra.mxu0 0
    %239 = vmatprep.subr.bf16.mxu0 0
    %240 = vmatpush1.bf16.msra.mxu0 0
    %241 = vmatprep.subr.bf16.mxu0 0
    %242 = vmatpush1.bf16.msra.mxu0 0
    %243 = vmatprep.subr.bf16.mxu0 0
    %244 = vmatpush1.bf16.msra.mxu0 %v225
    %245 = vmatprep.subr.bf16.mxu0 0
    %246 = vmatpush1.bf16.msra.mxu0 %v224
    %247 = vmatprep.subr.bf16.mxu0 0
    %248 = vmatpush2.bf16.msra.mxu0 0
    %249 = vmatprep.subr.bf16.mxu0 0
    %250 = vmatpush2.bf16.msra.mxu0 0
    %251 = vmatprep.subr.bf16.mxu0 0
    %252 = vmatpush2.bf16.msra.mxu0 0
    %253 = vmatprep.subr.bf16.mxu0 0
    %254 = vmatpush2.bf16.msra.mxu0 0
    %255 = vmatprep.subr.bf16.mxu0 0
    %256 = vmatpush2.bf16.msra.mxu0 0
    %257 = vmatprep.subr.bf16.mxu0 0
    %258 = vmatpush2.bf16.msra.mxu0 0
    %259 = vmatprep.subr.bf16.mxu0 0
    %260 = vmatpush2.bf16.msra.mxu0 0
    %261 = vmatprep.subr.bf16.mxu0 0
    %262 = vmatpush2.bf16.msra.mxu0 0
    %263 = vmatprep.mubr.bf16.mxu0 0
    %264 = vmatmul.mubr.bf16.gmra.mxu0 %v229
    %v265 = vpop.f32.mrf.mxu0
    %v266 = vadd.f32 %v214, %v265
    %v267 = vpop.f32.mrf.mxu0
    %v268 = vpop.f32.mrf.mxu0
    %v269 = vadd.f32 %v214, %v268
    %v270 = vpop.f32.mrf.mxu0
    %271 = vdwg.mxu0
    %v272 = vpack.c.bf16 %v269, %v266
    %v274 = vunpack.c.l.b16 %v272
    %v275 = vunpack.c.h.b16 %v272
    %v276 = vpack.c.b16 %v274, %v274
    %v277 = vpack.c.b16 %v275, %v275
    %280 = vst.msk [vmem:[#allocation14] sm:$0xf] %vm199, %v276
    %281 = vst.msk [vmem:[#allocation14 + $0x4] sm:$0xf] %vm199, %v277
    %v282 = vld [vmem:[#allocation7] sm:$0xff]
    %v283 = vld [vmem:[#allocation7 + $0x8] sm:$0xff]
    %v284 = vpack.c.bf16 %v283, %v282
    %v285 = vld [vmem:[#allocation11] sm:$0xf]
    %v286 = vld [vmem:[#allocation11 + $0x4] sm:$0xf]
    %v287 = vld [vmem:[#allocation11 + $0x8] sm:$0xf]
    %v288 = vld [vmem:[#allocation11 + $0xc] sm:$0xf]
    %v289 = vld [vmem:[%s8] sm:$0x1]
    %v291 = vlaneseq
    %v292 = vshrl.u32 %v291, 7
    %v293 = vsub.s32 0, %v292
    %v294 = vrot.slane %v289, %v293
    %v300 = vunpack.c.l.b16 %v285
    %v301 = vunpack.c.l.b16 %v286
    %v302 = vunpack.c.l.b16 %v287
    %v303 = vunpack.c.l.b16 %v288
    %v304 = vpack.c.b16 %v301, %v300
    %v305 = vpack.c.b16 %v303, %v302
    %v309 = vsel %vm146, %v284, 0
    %311 = vmatprep.subr.bf16.mxu0 0
    %312 = vmatpush1.bf16.msra.mxu0 0
    %313 = vmatprep.subr.bf16.mxu0 0
    %314 = vmatpush1.bf16.msra.mxu0 0
    %315 = vmatprep.subr.bf16.mxu0 0
    %316 = vmatpush1.bf16.msra.mxu0 0
    %317 = vmatprep.subr.bf16.mxu0 0
    %318 = vmatpush1.bf16.msra.mxu0 0
    %319 = vmatprep.subr.bf16.mxu0 0
    %320 = vmatpush1.bf16.msra.mxu0 0
    %321 = vmatprep.subr.bf16.mxu0 0
    %322 = vmatpush1.bf16.msra.mxu0 0
    %323 = vmatprep.subr.bf16.mxu0 0
    %324 = vmatpush1.bf16.msra.mxu0 %v305
    %325 = vmatprep.subr.bf16.mxu0 0
    %326 = vmatpush1.bf16.msra.mxu0 %v304
    %327 = vmatprep.subr.bf16.mxu0 0
    %328 = vmatpush2.bf16.msra.mxu0 0
    %329 = vmatprep.subr.bf16.mxu0 0
    %330 = vmatpush2.bf16.msra.mxu0 0
    %331 = vmatprep.subr.bf16.mxu0 0
    %332 = vmatpush2.bf16.msra.mxu0 0
    %333 = vmatprep.subr.bf16.mxu0 0
    %334 = vmatpush2.bf16.msra.mxu0 0
    %335 = vmatprep.subr.bf16.mxu0 0
    %336 = vmatpush2.bf16.msra.mxu0 0
    %337 = vmatprep.subr.bf16.mxu0 0
    %338 = vmatpush2.bf16.msra.mxu0 0
    %339 = vmatprep.subr.bf16.mxu0 0
    %340 = vmatpush2.bf16.msra.mxu0 0
    %341 = vmatprep.subr.bf16.mxu0 0
    %342 = vmatpush2.bf16.msra.mxu0 0
    %343 = vmatprep.mubr.bf16.mxu0 0
    %344 = vmatmul.mubr.bf16.gmra.mxu0 %v309
    %v345 = vpop.f32.mrf.mxu0
    %v346 = vadd.f32 %v294, %v345
    %v347 = vpop.f32.mrf.mxu0
    %v348 = vpop.f32.mrf.mxu0
    %v349 = vadd.f32 %v294, %v348
    %v350 = vpop.f32.mrf.mxu0
    %351 = vdwg.mxu0
    %v352 = vpack.c.bf16 %v349, %v346
    %v354 = vunpack.c.l.b16 %v352
    %v355 = vunpack.c.h.b16 %v352
    %v356 = vpack.c.b16 %v354, %v354
    %v357 = vpack.c.b16 %v355, %v355
    %360 = vst.msk [vmem:[#allocation16] sm:$0xf] %vm199, %v356
    %361 = vst.msk [vmem:[#allocation16 + $0x4] sm:$0xf] %vm199, %v357
    // Predicated region
    $region62: #{tpu_custom_call.1} parent=1 // pred_check
      _
    $region63: #{tpu_custom_call.1} parent=1 // pred_check_branch
      %363 = sbr.rel (0) target = $region65
    $region64: #{tpu_custom_call.1} parent=1 // pred_region
      %s365 = ssub.s32 128, 128
      %366 = vsyncadd [#allocation4], %s365
      %s367 = sshll.u32 [#allocation13], 4
      %s368 = int_to_ptr.vmem [resolvable:$true] %s367
      %373 = dma.vmem_to_hbm [thread:$0]  %s368, 128, %s9, [#allocation4], 64, 64, 4
    $region65: #{tpu_custom_call.1} parent=1 // pred_fallthru
      _
    // Predicated region
    $region66: #{tpu_custom_call.1} parent=1 // pred_check
      _
    $region67: #{tpu_custom_call.1} parent=1 // pred_check_branch
      %375 = sbr.rel (0) target = $region69
    $region68: #{tpu_custom_call.1} parent=1 // pred_region
      %s377 = ssub.s32 128, 128
      %378 = vsyncadd [#allocation15], %s377
      %s379 = sshll.u32 [#allocation14], 4
      %s380 = int_to_ptr.vmem [resolvable:$true] %s379
      %385 = dma.vmem_to_hbm [thread:$0]  %s380, 128, %s10, [#allocation15], 64, 64, 4
    $region69: #{tpu_custom_call.1} parent=1 // pred_fallthru
      _
    // Predicated region
    $region70: #{tpu_custom_call.1} parent=1 // pred_check
      _
    $region71: #{tpu_custom_call.1} parent=1 // pred_check_branch
      %387 = sbr.rel (0) target = $region73
    $region72: #{tpu_custom_call.1} parent=1 // pred_region
      %s389 = ssub.s32 128, 128
      %390 = vsyncadd [#allocation15], %s389
      %s391 = sshll.u32 [#allocation16], 4
      %s392 = int_to_ptr.vmem [resolvable:$true] %s391
      %397 = dma.vmem_to_hbm [thread:$0]  %s392, 128, %s11, [#allocation15], 64, 64, 4
    $region73: #{tpu_custom_call.1} parent=1 // pred_fallthru
      _
    // Predicated region
    $region74: #{tpu_custom_call.1} parent=1 // pred_check
      _
    $region75: #{tpu_custom_call.1} parent=1 // pred_check_branch
      %399 = sbr.rel (0) target = $region77
    $region76: #{tpu_custom_call.1} parent=1 // pred_region
      %400 = dma.done [#allocation4], 128
    $region77: #{tpu_custom_call.1} parent=1 // pred_fallthru
      _
    // Predicated region
    $region78: #{tpu_custom_call.1} parent=1 // pred_check
      _
    $region79: #{tpu_custom_call.1} parent=1 // pred_check_branch
      %402 = sbr.rel (0) target = $region81
    $region80: #{tpu_custom_call.1} parent=1 // pred_region
      %403 = dma.done [#allocation15], 128
    $region81: #{tpu_custom_call.1} parent=1 // pred_fallthru
      _
    // Predicated region
    $region82: #{tpu_custom_call.1} parent=1 // pred_check
      _
    $region83: #{tpu_custom_call.1} parent=1 // pred_check_branch
      %405 = sbr.rel (0) target = $region85
    $region84: #{tpu_custom_call.1} parent=1 // pred_region
      %406 = dma.done [#allocation15], 128
    $region85: #{tpu_custom_call.1} parent=1 // pred_fallthru
      _
    %407 = vsyncpa [#allocation3], 1
    %408 = vsyncpa [#allocation6], 1
    %409 = vsyncpa [#allocation9], 1
    %410 = vsyncpa [#allocation12], 1
    %411 = vsyncpa [#allocation4], 1
    %412 = vsyncpa [#allocation15], 1

</llo_original>
